<compile_context>
chip_gen: v6e
topology: v6e:2x2x1
jax: 0.10.0
libtpu: 0.0.40
codegen_flags: <defaults>
</compile_context>

<pallas_src>
import jax
import jax.numpy as jnp
from jax.experimental import pallas as pl
from jax.experimental.pallas import tpu as pltpu


# ---------------------------------------------------------------------------
# Model constants (synthetic small config)
# ---------------------------------------------------------------------------
NUM_USER, NUM_LIST, NUM_ITEM = 8, 8, 16
NUM_FACTORS = 32
HID = [32, 32]                 # params.hid_units
BATCH = 8

N_NODES = NUM_USER + NUM_LIST + NUM_ITEM        # 32 nodes total
F = HID[-1]                                     # 32 features per branch
F3 = 3 * F                                      # 96 packed feature columns

# Row layout of the bf16 weight slab (256 x 96)
_ROW_X = 0                                      # block-diag embeddings (32 x 96)
_ROW_A = N_NODES                                # block-diag A_hat      (32 x 32, padded)
_ROW_W1 = 2 * N_NODES                           # block-diag conv1 W    (96 x 96)
_ROW_W2 = 2 * N_NODES + F3                      # block-diag conv2 W    (96 x 96)
_W_ROWS = 2 * N_NODES + 2 * F3                  # 256

# Row layout of the f32 bias/head slab (34 x 96)
_ROW_B1 = 0                                     # per-node masked conv1 bias (32 x 96)
_ROW_B2 = N_NODES                               # conv2 bias row              (1 x 96)
_ROW_HEAD = N_NODES + 1                         # [fc3_w | fc4_w | b3+b4 ...]  (1 x 96)
_M_ROWS = N_NODES + 2                           # 34


# ---------------------------------------------------------------------------
# Single fused, gridless Pallas kernel
# ---------------------------------------------------------------------------
def _fused_kernel(idx_ref, w_ref, m_ref, out_ref):
    f32, bf16 = jnp.float32, jnp.bfloat16

    # Static slices of the packed slabs (views into the VMEM-resident blocks).
    X = w_ref[_ROW_X:_ROW_X + N_NODES, :]                 # (32, 96) bf16
    A = w_ref[_ROW_A:_ROW_A + N_NODES, 0:N_NODES]         # (32, 32) bf16
    W1 = w_ref[_ROW_W1:_ROW_W1 + F3, :]                   # (96, 96) bf16
    W2 = w_ref[_ROW_W2:_ROW_W2 + F3, :]                   # (96, 96) bf16
    B1 = m_ref[_ROW_B1:_ROW_B1 + N_NODES, :]              # (32, 96) f32 (masked)
    b2 = m_ref[_ROW_B2:_ROW_B2 + 1, :]                    # (1, 96)  f32
    hd = m_ref[_ROW_HEAD:_ROW_HEAD + 1, :]                # (1, 96)  f32

    # Combined one-hot gather matrix over the 32 global node rows (B, 32).
    bsz = out_ref.shape[0]
    idx = idx_ref[...]                                     # (B, 3) int32, global ids
    iota = jax.lax.broadcasted_iota(jnp.int32, (bsz, N_NODES), 1)
    onehot = ((iota == idx[:, 0:1]) | (iota == idx[:, 1:2]) |
              (iota == idx[:, 2:3])).astype(bf16)

    # Fold the gather into the final propagation (depends only on idx & A, so
    # the scheduler can overlap it with the layer-1 matmuls).
    ga = jnp.dot(onehot, A, preferred_element_type=f32).astype(bf16)   # (B, 32)

    # Layer 1 (all three branches at once): h1 = relu(A_bd @ (X_bd @ W1_bd) + b1)
    h1 = jnp.dot(X, W1, preferred_element_type=f32).astype(bf16)       # (32, 96)
    h1 = jnp.dot(A, h1, preferred_element_type=f32) + B1
    h1 = jnp.maximum(h1, 0.0).astype(bf16)     # ReLU; gnn dropout = identity (eval)

    # Layer 2 pre-propagation + fused gather:
    #   gathered = (onehot @ A_bd) @ (h1 @ W2_bd) + b2   -> (B, 96) = [e_u|e_l|e_i]
    h2 = jnp.dot(h1, W2, preferred_element_type=f32).astype(bf16)      # (32, 96)
    g = jnp.dot(ga, h2, preferred_element_type=f32) + b2               # (B, 96)

    # Head (get_emb_user_list3): sigmoid(fc3(e_u*e_i) + fc4(e_l*e_i)); dropout=id.
    e_user, e_list, e_item = g[:, 0:F], g[:, F:2 * F], g[:, 2 * F:3 * F]
    w3, w4 = hd[:, 0:F], hd[:, F:2 * F]
    logits = jnp.sum((e_user * w3 + e_list * w4) * e_item,
                     axis=-1, keepdims=True) + hd[:, 2 * F:2 * F + 1]
    # TODO(synk): for large BATCH, switch to a lane-dense (1, B) output layout.
    out_ref[...] = jax.nn.sigmoid(logits)


def _fused_forward(idx, wslab, mslab):
    bsz = idx.shape[0]
    vmem = pl.BlockSpec(memory_space=pltpu.MemorySpace.VMEM)
    return pl.pallas_call(
        _fused_kernel,
        out_shape=jax.ShapeDtypeStruct((bsz, 1), jnp.float32),
        in_specs=[vmem, vmem, vmem],
        out_specs=vmem,
    )(idx, wslab, mslab)


# ---------------------------------------------------------------------------
# One-time parameter packing (off the inference path)
# ---------------------------------------------------------------------------
def _block_diag(blocks):
    rows = sum(b.shape[0] for b in blocks)
    cols = sum(b.shape[1] for b in blocks)
    out = jnp.zeros((rows, cols), jnp.float32)
    r = c = 0
    for b in blocks:
        out = out.at[r:r + b.shape[0], c:c + b.shape[1]].set(b)
        r += b.shape[0]
        c += b.shape[1]
    return out


def pack_params(p):
    """Pack HyperTeNet params into two VMEM-friendly slabs (done once)."""
    emb = p["emb"]
    x_bd = _block_diag([emb[:NUM_USER],
                        emb[NUM_USER:NUM_USER + NUM_LIST],
                        emb[NUM_USER + NUM_LIST:]])                       # (32, 96)
    a_bd = _block_diag([p["A_user"], p["A_list"], p["A_item"]])           # (32, 32)
    a_bd = jnp.pad(a_bd, ((0, 0), (0, F3 - N_NODES)))                     # (32, 96)
    w1_bd = _block_diag([p["user_conv1"][0], p["list_conv1"][0], p["item_conv1"][0]])
    w2_bd = _block_diag([p["user_conv2"][0], p["list_conv2"][0], p["item_conv2"][0]])
    wslab = jnp.concatenate([x_bd, a_bd, w1_bd, w2_bd],
                            axis=0).astype(jnp.bfloat16)                  # (256, 96)
    assert wslab.shape == (_W_ROWS, F3)

    b1 = jnp.zeros((N_NODES, F3), jnp.float32)                  # masked per-node bias
    b1 = b1.at[0:NUM_USER, 0:F].set(p["user_conv1"][1])
    b1 = b1.at[NUM_USER:NUM_USER + NUM_LIST, F:2 * F].set(p["list_conv1"][1])
    b1 = b1.at[NUM_USER + NUM_LIST:, 2 * F:].set(p["item_conv1"][1])
    b2 = jnp.concatenate([p["user_conv2"][1], p["list_conv2"][1], p["item_conv2"][1]])
    head = jnp.zeros((F3,), jnp.float32)
    head = head.at[0:F].set(p["fc3"][0].reshape(F))
    head = head.at[F:2 * F].set(p["fc4"][0].reshape(F))
    head = head.at[2 * F].set(p["fc3"][1][0] + p["fc4"][1][0])
    mslab = jnp.concatenate([b1, b2[None, :], head[None, :]], axis=0)     # (34, 96)
    assert mslab.shape == (_M_ROWS, F3)
    return {"wslab": wslab, "mslab": mslab}


# ---------------------------------------------------------------------------
# HyperTeNet forward (network='gnn', include_hgnn=False)
# ---------------------------------------------------------------------------
@jax.jit
def hypertenet_forward(packed, user_indices, list_indices, item_indices):
    # Clamp + offset to global node ids (torch would error on OOB; the one-hot
    # gather would otherwise silently yield zeros).
    idx = jnp.stack([
        jnp.clip(user_indices, 0, NUM_USER - 1),
        NUM_USER + jnp.clip(list_indices, 0, NUM_LIST - 1),
        NUM_USER + NUM_LIST + jnp.clip(item_indices, 0, NUM_ITEM - 1),
    ], axis=1).astype(jnp.int32)
    return _fused_forward(idx, packed["wslab"], packed["mslab"]).reshape(-1)


# ---------------------------------------------------------------------------
# Pure-JAX f32 reference (unfused, per-branch) for correctness checking
# ---------------------------------------------------------------------------
def reference_forward(p, u, l, i):
    def gcn(a, x, c1, c2):
        h = jnp.maximum(a @ (x @ c1[0]) + c1[1], 0.0)
        return a @ (h @ c2[0]) + c2[1]
    ux = gcn(p["A_user"], p["emb"][:NUM_USER], p["user_conv1"], p["user_conv2"])
    lx = gcn(p["A_list"], p["emb"][NUM_USER:NUM_USER + NUM_LIST],
             p["list_conv1"], p["list_conv2"])
    ix = gcn(p["A_item"], p["emb"][NUM_USER + NUM_LIST:],
             p["item_conv1"], p["item_conv2"])
    e0, e1, e2 = ux[u], lx[l], ix[i]
    logits = ((e0 * e2) @ p["fc3"][0].reshape(F) + p["fc3"][1][0]
              + (e1 * e2) @ p["fc4"][0].reshape(F) + p["fc4"][1][0])
    return jax.nn.sigmoid(logits)


# ---------------------------------------------------------------------------
# Parameter / input construction (deterministic, synthetic)
# ---------------------------------------------------------------------------
def make_norm_adj(key, n, p=0.4):
    a = (jax.random.uniform(key, (n, n)) < p).astype(jnp.float32)
    a = jnp.maximum(a, a.T)                   # symmetric
    a = a * (1.0 - jnp.eye(n))                # setdiag(0)
    a_hat = a + jnp.eye(n)                    # add_self_loops
    deg = jnp.sum(a_hat, axis=1)
    dinv = 1.0 / jnp.sqrt(deg)
    return a_hat * dinv[:, None] * dinv[None, :]


def init_params(key):
    ks = jax.random.split(key, 16)
    std = (2.0 / (N_NODES + NUM_FACTORS)) ** 0.5   # xavier_normal_
    emb = std * jax.random.normal(ks[0], (N_NODES, NUM_FACTORS), jnp.float32)
    zero_rows = jnp.array([0, NUM_USER, NUM_USER + NUM_LIST])
    emb = emb.at[zero_rows].set(0.0)

    def lin(k, fin, fout):
        kw, kb = jax.random.split(k)
        bound = 1.0 / (fin ** 0.5)
        w = jax.random.uniform(kw, (fin, fout), jnp.float32, -bound, bound)
        b = jax.random.uniform(kb, (fout,), jnp.float32, -bound, bound)
        return w, b

    return {
        "emb": emb,
        "user_conv1": lin(ks[1], NUM_FACTORS, HID[-2]),
        "user_conv2": lin(ks[2], HID[-2], HID[-1]),
        "list_conv1": lin(ks[3], NUM_FACTORS, HID[-2]),
        "list_conv2": lin(ks[4], HID[-2], HID[-1]),
        "item_conv1": lin(ks[5], NUM_FACTORS, HID[-2]),
        "item_conv2": lin(ks[6], HID[-2], HID[-1]),
        "fc3": lin(ks[7], HID[-1], 1),
        "fc4": lin(ks[8], HID[-1], 1),
        "A_user": make_norm_adj(ks[9], NUM_USER),
        "A_list": make_norm_adj(ks[10], NUM_LIST),
        "A_item": make_norm_adj(ks[11], NUM_ITEM),
    }


if __name__ == "__main__":
    key = jax.random.PRNGKey(0)
    kp, ku, kl, ki = jax.random.split(key, 4)
    params = init_params(kp)
    packed = pack_params(params)            # one-time prep, off the inference path

    user_indices = jax.random.randint(ku, (BATCH,), 0, NUM_USER)
    list_indices = jax.random.randint(kl, (BATCH,), 0, NUM_LIST)
    item_indices = jax.random.randint(ki, (BATCH,), 0, NUM_ITEM)

    probs = hypertenet_forward(packed, user_indices, list_indices, item_indices)
    probs = jax.block_until_ready(probs)

    ref = reference_forward(params, user_indices, list_indices, item_indices)

    assert probs.shape == (BATCH,)
    assert bool(jnp.all(jnp.isfinite(probs)))
    assert bool(jnp.all((probs >= 0.0) & (probs <= 1.0)))
    assert bool(jnp.max(jnp.abs(probs - ref)) < 3e-2), \
        "kernel output mismatch vs f32 reference"
    print("KERNEL_OK")
</pallas_src>

<mosaic_0001>
module attributes {stable_mosaic.version = 11 : i64} {
  func.func @_fused_kernel(%arg0: memref<8x3xi32, #tpu.memory_space<vmem>>, %arg1: memref<256x96xbf16, #tpu.memory_space<vmem>>, %arg2: memref<34x96xf32, #tpu.memory_space<vmem>>, %arg3: memref<8x1xf32, #tpu.memory_space<vmem>>) attributes {dimension_semantics = [], scalar_prefetch = 0 : i64, scratch_operands = 0 : i64, tpu.core_type = #tpu.core_type<tc>} {
    %c0 = arith.constant 0 : index
    %c0_0 = arith.constant 0 : index
    %0 = vector.load %arg1[%c0, %c0_0] : memref<256x96xbf16, #tpu.memory_space<vmem>>, vector<32x96xbf16>
    %c32 = arith.constant 32 : index
    %c0_1 = arith.constant 0 : index
    %1 = vector.load %arg1[%c32, %c0_1] : memref<256x96xbf16, #tpu.memory_space<vmem>>, vector<32x32xbf16>
    %c64 = arith.constant 64 : index
    %c0_2 = arith.constant 0 : index
    %2 = vector.load %arg1[%c64, %c0_2] : memref<256x96xbf16, #tpu.memory_space<vmem>>, vector<96x96xbf16>
    %c160 = arith.constant 160 : index
    %c0_3 = arith.constant 0 : index
    %3 = vector.load %arg1[%c160, %c0_3] : memref<256x96xbf16, #tpu.memory_space<vmem>>, vector<96x96xbf16>
    %c0_4 = arith.constant 0 : index
    %c0_5 = arith.constant 0 : index
    %4 = vector.load %arg2[%c0_4, %c0_5] : memref<34x96xf32, #tpu.memory_space<vmem>>, vector<32x96xf32>
    %c32_6 = arith.constant 32 : index
    %c0_7 = arith.constant 0 : index
    %5 = vector.load %arg2[%c32_6, %c0_7] : memref<34x96xf32, #tpu.memory_space<vmem>>, vector<1x96xf32>
    %c33 = arith.constant 33 : index
    %c0_8 = arith.constant 0 : index
    %6 = vector.load %arg2[%c33, %c0_8] : memref<34x96xf32, #tpu.memory_space<vmem>>, vector<1x96xf32>
    %c0_9 = arith.constant 0 : index
    %c0_10 = arith.constant 0 : index
    %7 = vector.load %arg0[%c0_9, %c0_10] : memref<8x3xi32, #tpu.memory_space<vmem>>, vector<8x3xi32>
    %8 = tpu.iota {dimensions = array<i32: 1>} : vector<8x32xi32>
    %9 = vector.extract_strided_slice %7 {offsets = [0, 0], sizes = [8, 1], strides = [1, 1]} : vector<8x3xi32> to vector<8x1xi32>
    %10 = vector.broadcast %9 : vector<8x1xi32> to vector<8x32xi32>
    %11 = arith.cmpi eq, %8, %10 : vector<8x32xi32>
    %12 = vector.extract_strided_slice %7 {offsets = [0, 1], sizes = [8, 1], strides = [1, 1]} : vector<8x3xi32> to vector<8x1xi32>
    %13 = vector.broadcast %12 : vector<8x1xi32> to vector<8x32xi32>
    %14 = arith.cmpi eq, %8, %13 : vector<8x32xi32>
    %15 = arith.ori %11, %14 : vector<8x32xi1>
    %16 = vector.extract_strided_slice %7 {offsets = [0, 2], sizes = [8, 1], strides = [1, 1]} : vector<8x3xi32> to vector<8x1xi32>
    %17 = vector.broadcast %16 : vector<8x1xi32> to vector<8x32xi32>
    %18 = arith.cmpi eq, %8, %17 : vector<8x32xi32>
    %19 = arith.ori %15, %18 : vector<8x32xi1>
    %20 = arith.extui %19 : vector<8x32xi1> to vector<8x32xi32>
    %21 = arith.sitofp %20 : vector<8x32xi32> to vector<8x32xf32>
    %22 = arith.truncf %21 : vector<8x32xf32> to vector<8x32xbf16>
    %cst = arith.constant dense<0.000000e+00> : vector<8x32xf32>
    %23 = tpu.matmul %22, %1, %cst {dimension_numbers = #tpu.dot_dimension_numbers<[1], [0], [0], [1], [0, 0, 1, 1], [], []>} : vector<8x32xbf16>, vector<32x32xbf16>, vector<8x32xf32> -> vector<8x32xf32>
    %24 = arith.truncf %23 : vector<8x32xf32> to vector<8x32xbf16>
    %cst_11 = arith.constant dense<0.000000e+00> : vector<32x96xf32>
    %25 = tpu.matmul %0, %2, %cst_11 {dimension_numbers = #tpu.dot_dimension_numbers<[1], [0], [0], [1], [0, 0, 1, 1], [], []>} : vector<32x96xbf16>, vector<96x96xbf16>, vector<32x96xf32> -> vector<32x96xf32>
    %26 = arith.truncf %25 : vector<32x96xf32> to vector<32x96xbf16>
    %cst_12 = arith.constant dense<0.000000e+00> : vector<32x96xf32>
    %27 = tpu.matmul %1, %26, %cst_12 {dimension_numbers = #tpu.dot_dimension_numbers<[1], [0], [0], [1], [0, 0, 1, 1], [], []>} : vector<32x32xbf16>, vector<32x96xbf16>, vector<32x96xf32> -> vector<32x96xf32>
    %28 = arith.addf %27, %4 : vector<32x96xf32>
    %cst_13 = arith.constant 0.000000e+00 : f32
    %29 = vector.broadcast %cst_13 : f32 to vector<32x96xf32>
    %30 = arith.maximumf %28, %29 : vector<32x96xf32>
    %31 = arith.truncf %30 : vector<32x96xf32> to vector<32x96xbf16>
    %cst_14 = arith.constant dense<0.000000e+00> : vector<32x96xf32>
    %32 = tpu.matmul %31, %3, %cst_14 {dimension_numbers = #tpu.dot_dimension_numbers<[1], [0], [0], [1], [0, 0, 1, 1], [], []>} : vector<32x96xbf16>, vector<96x96xbf16>, vector<32x96xf32> -> vector<32x96xf32>
    %33 = arith.truncf %32 : vector<32x96xf32> to vector<32x96xbf16>
    %cst_15 = arith.constant dense<0.000000e+00> : vector<8x96xf32>
    %34 = tpu.matmul %24, %33, %cst_15 {dimension_numbers = #tpu.dot_dimension_numbers<[1], [0], [0], [1], [0, 0, 1, 1], [], []>} : vector<8x32xbf16>, vector<32x96xbf16>, vector<8x96xf32> -> vector<8x96xf32>
    %35 = vector.broadcast %5 : vector<1x96xf32> to vector<8x96xf32>
    %36 = arith.addf %34, %35 : vector<8x96xf32>
    %37 = vector.extract_strided_slice %36 {offsets = [0, 0], sizes = [8, 32], strides = [1, 1]} : vector<8x96xf32> to vector<8x32xf32>
    %38 = vector.extract_strided_slice %36 {offsets = [0, 32], sizes = [8, 32], strides = [1, 1]} : vector<8x96xf32> to vector<8x32xf32>
    %39 = vector.extract_strided_slice %36 {offsets = [0, 64], sizes = [8, 32], strides = [1, 1]} : vector<8x96xf32> to vector<8x32xf32>
    %40 = vector.extract_strided_slice %6 {offsets = [0, 0], sizes = [1, 32], strides = [1, 1]} : vector<1x96xf32> to vector<1x32xf32>
    %41 = vector.extract_strided_slice %6 {offsets = [0, 32], sizes = [1, 32], strides = [1, 1]} : vector<1x96xf32> to vector<1x32xf32>
    %42 = vector.broadcast %40 : vector<1x32xf32> to vector<8x32xf32>
    %43 = arith.mulf %37, %42 : vector<8x32xf32>
    %44 = vector.broadcast %41 : vector<1x32xf32> to vector<8x32xf32>
    %45 = arith.mulf %38, %44 : vector<8x32xf32>
    %46 = arith.addf %43, %45 : vector<8x32xf32>
    %47 = arith.mulf %46, %39 : vector<8x32xf32>
    %cst_16 = arith.constant dense<0.000000e+00> : vector<8xf32>
    %48 = vector.multi_reduction <add>, %47, %cst_16 [1] : vector<8x32xf32> to vector<8xf32>
    %49 = vector.shape_cast %48 : vector<8xf32> to vector<8x1xf32>
    %50 = vector.extract_strided_slice %6 {offsets = [0, 64], sizes = [1, 1], strides = [1, 1]} : vector<1x96xf32> to vector<1x1xf32>
    %51 = vector.broadcast %50 : vector<1x1xf32> to vector<8x1xf32>
    %52 = arith.addf %49, %51 : vector<8x1xf32>
    %53 = arith.negf %52 : vector<8x1xf32>
    %54 = math.exp %53 : vector<8x1xf32>
    %cst_17 = arith.constant 1.000000e+00 : f32
    %55 = vector.broadcast %cst_17 : f32 to vector<8x1xf32>
    %56 = arith.addf %55, %54 : vector<8x1xf32>
    %57 = arith.divf %55, %56 : vector<8x1xf32>
    %c0_18 = arith.constant 0 : index
    %c0_19 = arith.constant 0 : index
    %58 = vector.load %arg3[%c0_18, %c0_19] : memref<8x1xf32, #tpu.memory_space<vmem>>, vector<8x1xf32>
    tpu.vector_store %arg3[%c0_18, %c0_19], %57 {strides = array<i32>} : memref<8x1xf32, #tpu.memory_space<vmem>>, vector<8x1xf32>,
    return
  }
}

</mosaic_0001>

<llo_original>
// kernel: hypertenet_forward.1
$region0: #{hypertenet_forward.1}
  #allocation0 [shape = 'u32[]', space=smem, size = 0x4, offset = 0x4, fixed_abs, tag = 'smem constant byte address 0x4 - core index']
  #allocation1 [shape = 'u32[144,128]{1,0:T(1,128)}', space=vmem, size = 0x12000, scoped, tag = 'internal scratch']
  %s0 = inlined_call_operand.vmem [shape: s32[8,3], index: 0, kind: input, shape index: {}]
  %s1 = inlined_call_operand.vmem [shape: bf16[256,96], index: 1, kind: input, shape index: {}]
  %s2 = inlined_call_operand.vmem [shape: f32[34,96], index: 2, kind: input, shape index: {}]
  %s3 = inlined_call_operand.vmem [shape: f32[8,1], index: 3, kind: output, shape index: {}]
  %s4 = sld [smem:[#allocation0]]
  $region22: #{hypertenet_forward.1} parent=0
    _
  %s6 = ssub.s32 1, %s4
  %s7 = scalar_select 0, %s6, %s4
  // Predicated region
  $region2: #{hypertenet_forward.1} parent=0 // pred_check
    _
  $region3: #{hypertenet_forward.1} parent=0 // pred_check_branch
    %9 = sbr.rel (0) target = $region5
  $region4: #{hypertenet_forward.1} parent=0 // pred_region
    _
  $region5: #{hypertenet_forward.1} parent=0 // pred_fallthru
    _
  // Predicated region
  $region6: #{hypertenet_forward.1} parent=0 // pred_check
    _
  $region7: #{hypertenet_forward.1} parent=0 // pred_check_branch
    %11 = sbr.rel (0) target = $region9
  $region8: #{hypertenet_forward.1} parent=0 // pred_region
    _
  $region9: #{hypertenet_forward.1} parent=0 // pred_fallthru
    _
  // Predicated region
  $region10: #{hypertenet_forward.1} parent=0 // pred_check
    _
  $region11: #{hypertenet_forward.1} parent=0 // pred_check_branch
    %13 = sbr.rel (0) target = $region13
  $region12: #{hypertenet_forward.1} parent=0 // pred_region
    _
  $region13: #{hypertenet_forward.1} parent=0 // pred_fallthru
    _
  %v15 = vld [vmem:[%s1] sm:$0xf]
  %v16 = vld [vmem:[%s1 + $0x4] sm:$0xf]
  %v17 = vld [vmem:[%s1 + $0x8] sm:$0xf]
  %v18 = vld [vmem:[%s1 + $0xc] sm:$0xf]
  %v19 = vld [vmem:[%s1 + $0x10] sm:$0xf]
  %v20 = vld [vmem:[%s1 + $0x14] sm:$0xf]
  %v21 = vld [vmem:[%s1 + $0x18] sm:$0xf]
  %v22 = vld [vmem:[%s1 + $0x1c] sm:$0xf]
  %v23 = vld [vmem:[%s1 + $0x20] sm:$0xf]
  %v24 = vld [vmem:[%s1 + $0x24] sm:$0xf]
  %v25 = vld [vmem:[%s1 + $0x28] sm:$0xf]
  %v26 = vld [vmem:[%s1 + $0x2c] sm:$0xf]
  %v27 = vld [vmem:[%s1 + $0x30] sm:$0xf]
  %v28 = vld [vmem:[%s1 + $0x34] sm:$0xf]
  %v29 = vld [vmem:[%s1 + $0x38] sm:$0xf]
  %v30 = vld [vmem:[%s1 + $0x3c] sm:$0xf]
  %v31 = vld [vmem:[%s1 + $0x40] sm:$0xf]
  %v32 = vld [vmem:[%s1 + $0x44] sm:$0xf]
  %v33 = vld [vmem:[%s1 + $0x48] sm:$0xf]
  %v34 = vld [vmem:[%s1 + $0x4c] sm:$0xf]
  %v35 = vld [vmem:[%s1 + $0x50] sm:$0xf]
  %v36 = vld [vmem:[%s1 + $0x54] sm:$0xf]
  %v37 = vld [vmem:[%s1 + $0x58] sm:$0xf]
  %v38 = vld [vmem:[%s1 + $0x5c] sm:$0xf]
  %v39 = vld [vmem:[%s1 + $0x60] sm:$0xf]
  %v40 = vld [vmem:[%s1 + $0x64] sm:$0xf]
  %v41 = vld [vmem:[%s1 + $0x68] sm:$0xf]
  %v42 = vld [vmem:[%s1 + $0x6c] sm:$0xf]
  %v43 = vld [vmem:[%s1 + $0x70] sm:$0xf]
  %v44 = vld [vmem:[%s1 + $0x74] sm:$0xf]
  %v45 = vld [vmem:[%s1 + $0x78] sm:$0xf]
  %v46 = vld [vmem:[%s1 + $0x7c] sm:$0xf]
  %v47 = vld [vmem:[%s2] sm:$0xff]
  %v48 = vld [vmem:[%s2 + $0x8] sm:$0xff]
  %v49 = vld [vmem:[%s2 + $0x10] sm:$0xff]
  %v50 = vld [vmem:[%s2 + $0x18] sm:$0xff]
  %v51 = vld [vmem:[%s2 + $0x20] sm:$0x1]
  %v52 = vld [vmem:[%s2 + $0x21] sm:$0x1]
  %v53 = vld [vmem:[%s0] sm:$0xff]
  %v54 = vlaneseq
  %v55 = vand.u32 %v54, 127
  %56 = vset.pattern.permute.xlu0 0
  %57 = vperm.xlu0 %56, %v53
  %v58 = vpop.permute.xlu0 %57
  %vm59 = vcmp.eq.s32.totalorder %v55, %v58
  %60 = vset.pattern.permute.xlu0 1
  %61 = vperm.xlu0 %60, %v53
  %v62 = vpop.permute.xlu0 %61
  %vm63 = vcmp.eq.s32.totalorder %v55, %v62
  %vm64 = vmor %vm59, %vm63
  %65 = vset.pattern.permute.xlu0 2
  %66 = vperm.xlu0 %65, %v53
  %v67 = vpop.permute.xlu0 %66
  %vm68 = vcmp.eq.s32.totalorder %v55, %v67
  %vm69 = vmor %vm64, %vm68
  %v70 = vsel %vm69, 1, 0
  %v71 = vcvt.s32.f32 %v70
  %v72 = vpack.c.bf16 %v71, %v71
  %v77 = vunpack.c.l.b16 %v19
  %v78 = vunpack.c.l.b16 %v20
  %v79 = vunpack.c.l.b16 %v21
  %v80 = vunpack.c.l.b16 %v22
  %v81 = vpack.c.b16 %v78, %v77
  %v82 = vpack.c.b16 %v80, %v79
  %vm85 = vcmask 261120
  %v87 = vsel %vm85, %v72, 0
  %89 = vmatprep.subr.bf16.mxu0 0
  %90 = vmatpush1.bf16.msra.mxu0 0
  %91 = vmatprep.subr.bf16.mxu0 0
  %92 = vmatpush1.bf16.msra.mxu0 0
  %93 = vmatprep.subr.bf16.mxu0 0
  %94 = vmatpush1.bf16.msra.mxu0 0
  %95 = vmatprep.subr.bf16.mxu0 0
  %96 = vmatpush1.bf16.msra.mxu0 0
  %97 = vmatprep.subr.bf16.mxu0 0
  %98 = vmatpush1.bf16.msra.mxu0 0
  %99 = vmatprep.subr.bf16.mxu0 0
  %100 = vmatpush1.bf16.msra.mxu0 0
  %101 = vmatprep.subr.bf16.mxu0 0
  %102 = vmatpush1.bf16.msra.mxu0 %v82
  %103 = vmatprep.subr.bf16.mxu0 0
  %104 = vmatpush1.bf16.msra.mxu0 %v81
  %105 = vmatprep.subr.bf16.mxu0 0
  %106 = vmatpush2.bf16.msra.mxu0 0
  %107 = vmatprep.subr.bf16.mxu0 0
  %108 = vmatpush2.bf16.msra.mxu0 0
  %109 = vmatprep.subr.bf16.mxu0 0
  %110 = vmatpush2.bf16.msra.mxu0 0
  %111 = vmatprep.subr.bf16.mxu0 0
  %112 = vmatpush2.bf16.msra.mxu0 0
  %113 = vmatprep.subr.bf16.mxu0 0
  %114 = vmatpush2.bf16.msra.mxu0 0
  %115 = vmatprep.subr.bf16.mxu0 0
  %116 = vmatpush2.bf16.msra.mxu0 0
  %117 = vmatprep.subr.bf16.mxu0 0
  %118 = vmatpush2.bf16.msra.mxu0 0
  %119 = vmatprep.subr.bf16.mxu0 0
  %120 = vmatpush2.bf16.msra.mxu0 0
  %121 = vmatprep.mubr.bf16.mxu0 0
  %122 = vmatmul.mubr.bf16.gmra.mxu0 %v87
  %v123 = vpop.f32.mrf.mxu0
  %v124 = vadd.f32 0.0, %v123
  %v125 = vpop.f32.mrf.mxu0
  %v126 = vpop.f32.mrf.mxu0
  %v127 = vpop.f32.mrf.mxu0
  %128 = vdwg.mxu0
  %v129 = vpack.c.bf16 %v124, %v124
  %v134 = vunpack.c.l.b16 %v15
  %v135 = vunpack.c.l.b16 %v16
  %v136 = vunpack.c.l.b16 %v17
  %v137 = vunpack.c.l.b16 %v18
  %v138 = vpack.c.b16 %v135, %v134
  %v139 = vpack.c.b16 %v137, %v136
  %v152 = vunpack.c.l.b16 %v23
  %v153 = vunpack.c.l.b16 %v24
  %v154 = vunpack.c.l.b16 %v25
  %v155 = vunpack.c.l.b16 %v26
  %v156 = vunpack.c.l.b16 %v27
  %v157 = vunpack.c.l.b16 %v28
  %v158 = vunpack.c.l.b16 %v29
  %v159 = vunpack.c.l.b16 %v30
  %v160 = vunpack.c.l.b16 %v31
  %v161 = vunpack.c.l.b16 %v32
  %v162 = vunpack.c.l.b16 %v33
  %v163 = vunpack.c.l.b16 %v34
  %v164 = vpack.c.b16 %v153, %v152
  %v165 = vpack.c.b16 %v155, %v154
  %v166 = vpack.c.b16 %v157, %v156
  %v167 = vpack.c.b16 %v159, %v158
  %v168 = vpack.c.b16 %v161, %v160
  %v169 = vpack.c.b16 %v163, %v162
  %vm176 = vcmask 785408
  %v178 = vsel %vm176, %v138, 0
  %v181 = vsel %vm176, %v139, 0
  %183 = vmatprep.subr.bf16.mxu0 0
  %184 = vmatpush1.bf16.msra.mxu0 0
  %185 = vmatprep.subr.bf16.mxu0 0
  %186 = vmatpush1.bf16.msra.mxu0 0
  %187 = vmatprep.subr.bf16.mxu0 0
  %188 = vmatpush1.bf16.msra.mxu0 %v169
  %189 = vmatprep.subr.bf16.mxu0 0
  %190 = vmatpush1.bf16.msra.mxu0 %v168
  %191 = vmatprep.subr.bf16.mxu0 0
  %192 = vmatpush1.bf16.msra.mxu0 %v167
  %193 = vmatprep.subr.bf16.mxu0 0
  %194 = vmatpush1.bf16.msra.mxu0 %v166
  %195 = vmatprep.subr.bf16.mxu0 0
  %196 = vmatpush1.bf16.msra.mxu0 %v165
  %197 = vmatprep.subr.bf16.mxu0 0
  %198 = vmatpush1.bf16.msra.mxu0 %v164
  %199 = vmatprep.subr.bf16.mxu0 0
  %200 = vmatpush2.bf16.msra.mxu0 0
  %201 = vmatprep.subr.bf16.mxu0 0
  %202 = vmatpush2.bf16.msra.mxu0 0
  %203 = vmatprep.subr.bf16.mxu0 0
  %204 = vmatpush2.bf16.msra.mxu0 0
  %205 = vmatprep.subr.bf16.mxu0 0
  %206 = vmatpush2.bf16.msra.mxu0 0
  %207 = vmatprep.subr.bf16.mxu0 0
  %208 = vmatpush2.bf16.msra.mxu0 0
  %209 = vmatprep.subr.bf16.mxu0 0
  %210 = vmatpush2.bf16.msra.mxu0 0
  %211 = vmatprep.subr.bf16.mxu0 0
  %212 = vmatpush2.bf16.msra.mxu0 0
  %213 = vmatprep.subr.bf16.mxu0 0
  %214 = vmatpush2.bf16.msra.mxu0 0
  %215 = vmatprep.mubr.bf16.mxu0 0
  %216 = vmatmul.mubr.bf16.gmra.mxu0 %v178
  %v217 = vpop.f32.mrf.mxu0
  %v218 = vadd.f32 0.0, %v217
  %v219 = vpop.f32.mrf.mxu0
  %v220 = vpop.f32.mrf.mxu0
  %v221 = vadd.f32 0.0, %v220
  %v222 = vpop.f32.mrf.mxu0
  %223 = vmatprep.mubr.bf16.mxu0 0
  %224 = vmatmul.mubr.bf16.gmra.mxu0 %v181
  %v225 = vpop.f32.mrf.mxu0
  %v226 = vadd.f32 0.0, %v225
  %v227 = vpop.f32.mrf.mxu0
  %v228 = vpop.f32.mrf.mxu0
  %v229 = vadd.f32 0.0, %v228
  %v230 = vpop.f32.mrf.mxu0
  %231 = vdwg.mxu0
  %v232 = vpack.c.bf16 %v221, %v218
  %v233 = vpack.c.bf16 %v229, %v226
  %v235 = vsel %vm85, %v81, 0
  %v238 = vsel %vm85, %v82, 0
  %240 = vmatprep.subr.bf16.mxu0 0
  %241 = vmatpush1.bf16.msra.mxu0 0
  %242 = vmatprep.subr.bf16.mxu0 0
  %243 = vmatpush1.bf16.msra.mxu0 0
  %244 = vmatprep.subr.bf16.mxu0 0
  %245 = vmatpush1.bf16.msra.mxu0 0
  %246 = vmatprep.subr.bf16.mxu0 0
  %247 = vmatpush1.bf16.msra.mxu0 0
  %248 = vmatprep.subr.bf16.mxu0 0
  %249 = vmatpush1.bf16.msra.mxu0 0
  %250 = vmatprep.subr.bf16.mxu0 0
  %251 = vmatpush1.bf16.msra.mxu0 0
  %252 = vmatprep.subr.bf16.mxu0 0
  %253 = vmatpush1.bf16.msra.mxu0 %v233
  %254 = vmatprep.subr.bf16.mxu0 0
  %255 = vmatpush1.bf16.msra.mxu0 %v232
  %256 = vmatprep.subr.bf16.mxu0 0
  %257 = vmatpush2.bf16.msra.mxu0 0
  %258 = vmatprep.subr.bf16.mxu0 0
  %259 = vmatpush2.bf16.msra.mxu0 0
  %260 = vmatprep.subr.bf16.mxu0 0
  %261 = vmatpush2.bf16.msra.mxu0 0
  %262 = vmatprep.subr.bf16.mxu0 0
  %263 = vmatpush2.bf16.msra.mxu0 0
  %264 = vmatprep.subr.bf16.mxu0 0
  %265 = vmatpush2.bf16.msra.mxu0 0
  %266 = vmatprep.subr.bf16.mxu0 0
  %267 = vmatpush2.bf16.msra.mxu0 0
  %268 = vmatprep.subr.bf16.mxu0 0
  %269 = vmatpush2.bf16.msra.mxu0 0
  %270 = vmatprep.subr.bf16.mxu0 0
  %271 = vmatpush2.bf16.msra.mxu0 0
  %272 = vmatprep.mubr.bf16.mxu0 0
  %273 = vmatmul.mubr.bf16.gmra.mxu0 %v235
  %v274 = vpop.f32.mrf.mxu0
  %v275 = vadd.f32 %v47, %v274
  %v276 = vpop.f32.mrf.mxu0
  %v277 = vpop.f32.mrf.mxu0
  %v278 = vadd.f32 %v48, %v277
  %v279 = vpop.f32.mrf.mxu0
  %280 = vmatprep.mubr.bf16.mxu0 0
  %281 = vmatmul.mubr.bf16.gmra.mxu0 %v238
  %v282 = vpop.f32.mrf.mxu0
  %v283 = vadd.f32 %v49, %v282
  %v284 = vpop.f32.mrf.mxu0
  %v285 = vpop.f32.mrf.mxu0
  %v286 = vadd.f32 %v50, %v285
  %v287 = vpop.f32.mrf.mxu0
  %288 = vdwg.mxu0
  %v289 = vmax.f32 %v275, 0.0
  %v290 = vmax.f32 %v278, 0.0
  %v291 = vmax.f32 %v283, 0.0
  %v292 = vmax.f32 %v286, 0.0
  %v293 = vpack.c.bf16 %v290, %v289
  %v294 = vpack.c.bf16 %v292, %v291
  %v307 = vunpack.c.l.b16 %v35
  %v308 = vunpack.c.l.b16 %v36
  %v309 = vunpack.c.l.b16 %v37
  %v310 = vunpack.c.l.b16 %v38
  %v311 = vunpack.c.l.b16 %v39
  %v312 = vunpack.c.l.b16 %v40
  %v313 = vunpack.c.l.b16 %v41
  %v314 = vunpack.c.l.b16 %v42
  %v315 = vunpack.c.l.b16 %v43
  %v316 = vunpack.c.l.b16 %v44
  %v317 = vunpack.c.l.b16 %v45
  %v318 = vunpack.c.l.b16 %v46
  %v319 = vpack.c.b16 %v308, %v307
  %v320 = vpack.c.b16 %v310, %v309
  %v321 = vpack.c.b16 %v312, %v311
  %v322 = vpack.c.b16 %v314, %v313
  %v323 = vpack.c.b16 %v316, %v315
  %v324 = vpack.c.b16 %v318, %v317
  %v332 = vsel %vm176, %v293, 0
  %v335 = vsel %vm176, %v294, 0
  %337 = vmatprep.subr.bf16.mxu0 0
  %338 = vmatpush1.bf16.msra.mxu0 0
  %339 = vmatprep.subr.bf16.mxu0 0
  %340 = vmatpush1.bf16.msra.mxu0 0
  %341 = vmatprep.subr.bf16.mxu0 0
  %342 = vmatpush1.bf16.msra.mxu0 %v324
  %343 = vmatprep.subr.bf16.mxu0 0
  %344 = vmatpush1.bf16.msra.mxu0 %v323
  %345 = vmatprep.subr.bf16.mxu0 0
  %346 = vmatpush1.bf16.msra.mxu0 %v322
  %347 = vmatprep.subr.bf16.mxu0 0
  %348 = vmatpush1.bf16.msra.mxu0 %v321
  %349 = vmatprep.subr.bf16.mxu0 0
  %350 = vmatpush1.bf16.msra.mxu0 %v320
  %351 = vmatprep.subr.bf16.mxu0 0
  %352 = vmatpush1.bf16.msra.mxu0 %v319
  %353 = vmatprep.subr.bf16.mxu0 0
  %354 = vmatpush2.bf16.msra.mxu0 0
  %355 = vmatprep.subr.bf16.mxu0 0
  %356 = vmatpush2.bf16.msra.mxu0 0
  %357 = vmatprep.subr.bf16.mxu0 0
  %358 = vmatpush2.bf16.msra.mxu0 0
  %359 = vmatprep.subr.bf16.mxu0 0
  %360 = vmatpush2.bf16.msra.mxu0 0
  %361 = vmatprep.subr.bf16.mxu0 0
  %362 = vmatpush2.bf16.msra.mxu0 0
  %363 = vmatprep.subr.bf16.mxu0 0
  %364 = vmatpush2.bf16.msra.mxu0 0
  %365 = vmatprep.subr.bf16.mxu0 0
  %366 = vmatpush2.bf16.msra.mxu0 0
  %367 = vmatprep.subr.bf16.mxu0 0
  %368 = vmatpush2.bf16.msra.mxu0 0
  %369 = vmatprep.mubr.bf16.mxu0 0
  %370 = vmatmul.mubr.bf16.gmra.mxu0 %v332
  %v371 = vpop.f32.mrf.mxu0
  %v372 = vadd.f32 0.0, %v371
  %v373 = vpop.f32.mrf.mxu0
  %v374 = vpop.f32.mrf.mxu0
  %v375 = vadd.f32 0.0, %v374
  %v376 = vpop.f32.mrf.mxu0
  %377 = vmatprep.mubr.bf16.mxu0 0
  %378 = vmatmul.mubr.bf16.gmra.mxu0 %v335
  %v379 = vpop.f32.mrf.mxu0
  %v380 = vadd.f32 0.0, %v379
  %v381 = vpop.f32.mrf.mxu0
  %v382 = vpop.f32.mrf.mxu0
  %v383 = vadd.f32 0.0, %v382
  %v384 = vpop.f32.mrf.mxu0
  %385 = vdwg.mxu0
  %v386 = vpack.c.bf16 %v375, %v372
  %v387 = vpack.c.bf16 %v383, %v380
  %v388 = vlaneseq
  %v389 = vshrl.u32 %v388, 7
  %v390 = vsub.s32 0, %v389
  %v391 = vrot.slane %v51, %v390
  %v393 = vsel %vm85, %v129, 0
  %395 = vmatprep.subr.bf16.mxu0 0
  %396 = vmatpush1.bf16.msra.mxu0 0
  %397 = vmatprep.subr.bf16.mxu0 0
  %398 = vmatpush1.bf16.msra.mxu0 0
  %399 = vmatprep.subr.bf16.mxu0 0
  %400 = vmatpush1.bf16.msra.mxu0 0
  %401 = vmatprep.subr.bf16.mxu0 0
  %402 = vmatpush1.bf16.msra.mxu0 0
  %403 = vmatprep.subr.bf16.mxu0 0
  %404 = vmatpush1.bf16.msra.mxu0 0
  %405 = vmatprep.subr.bf16.mxu0 0
  %406 = vmatpush1.bf16.msra.mxu0 0
  %407 = vmatprep.subr.bf16.mxu0 0
  %408 = vmatpush1.bf16.msra.mxu0 %v387
  %409 = vmatprep.subr.bf16.mxu0 0
  %410 = vmatpush1.bf16.msra.mxu0 %v386
  %411 = vmatprep.subr.bf16.mxu0 0
  %412 = vmatpush2.bf16.msra.mxu0 0
  %413 = vmatprep.subr.bf16.mxu0 0
  %414 = vmatpush2.bf16.msra.mxu0 0
  %415 = vmatprep.subr.bf16.mxu0 0
  %416 = vmatpush2.bf16.msra.mxu0 0
  %417 = vmatprep.subr.bf16.mxu0 0
  %418 = vmatpush2.bf16.msra.mxu0 0
  %419 = vmatprep.subr.bf16.mxu0 0
  %420 = vmatpush2.bf16.msra.mxu0 0
  %421 = vmatprep.subr.bf16.mxu0 0
  %422 = vmatpush2.bf16.msra.mxu0 0
  %423 = vmatprep.subr.bf16.mxu0 0
  %424 = vmatpush2.bf16.msra.mxu0 0
  %425 = vmatprep.subr.bf16.mxu0 0
  %426 = vmatpush2.bf16.msra.mxu0 0
  %427 = vmatprep.mubr.bf16.mxu0 0
  %428 = vmatmul.mubr.bf16.gmra.mxu0 %v393
  %v429 = vpop.f32.mrf.mxu0
  %v430 = vadd.f32 %v391, %v429
  %v431 = vpop.f32.mrf.mxu0
  %v432 = vpop.f32.mrf.mxu0
  %v433 = vpop.f32.mrf.mxu0
  %434 = vdwg.mxu0
  %v435 = vlaneseq
  %v436 = vshrl.u32 %v435, 7
  %v437 = vsub.s32 0, %v436
  %v438 = vrot.slane %v52, %v437
  %v439 = vmul.f32 %v430, %v438
  %441 = vrot.lane.b32.xlu0 %v439, 96
  %v442 = vpop.permute.xlu0 %441
  %v444 = vadd.f32 %v439, %v442
  %446 = vrot.lane.b32.xlu0 %v430, 64
  %v447 = vpop.permute.xlu0 %446
  %v449 = vmul.f32 %v444, %v447
  %v450 = vsel %vm85, %v449, 0.0
  %451 = vadd.xlane.f32.xlu0 %v450
  %v452 = vpop.xlane.xlu0 %451
  %v453 = vadd.f32 %v452, %v438
  %v454 = vxor.u32 %v453, 2147483648
  %v455 = vmul.f32 %v454, 1.442695
  %v456 = vpow.pop %v455
  %v457 = vadd.f32 %v456, 1.0
  %v458 = vrcp.pop %v457
  %v459 = vmul.f32 1.0, %v458
  %461 = vrot.lane.b32.xlu0 %v459, 64
  %v462 = vpop.permute.xlu0 %461
  %vm464 = vcmask 7168
  %465 = vst.msk [vmem:[%s3] sm:$0xff] %vm464, %v462
  // Predicated region
  $region14: #{hypertenet_forward.1} parent=0 // pred_check
    _
  $region15: #{hypertenet_forward.1} parent=0 // pred_check_branch
    %467 = sbr.rel (0) target = $region17
  $region16: #{hypertenet_forward.1} parent=0 // pred_region
    _
  $region17: #{hypertenet_forward.1} parent=0 // pred_fallthru
    _
  // Predicated region
  $region18: #{hypertenet_forward.1} parent=0 // pred_check
    _
  $region19: #{hypertenet_forward.1} parent=0 // pred_check_branch
    %469 = sbr.rel (0) target = $region21
  $region20: #{hypertenet_forward.1} parent=0 // pred_region
    _
  $region21: #{hypertenet_forward.1} parent=0 // pred_fallthru
    _

</llo_original>
